<compile_context>
chip_gen: v7x
topology: tpu7x:2x2x1
jax: 0.10.0
libtpu: 0.0.40
codegen_flags: <defaults>
</compile_context>

<pallas_src>
import functools
import math

import jax
import jax.numpy as jnp
from jax.experimental import pallas as pl
from jax.experimental.pallas import tpu as pltpu


def _round_up(x, m):
    return ((x + m - 1) // m) * m


# -----------------------------------------------------------------------------
# Pallas kernel: one (TL, GG*TCo) output tile of a grouped / strided Conv1d.
#   x_ref : (TL, GG*sCgin)      current L-tile, phase-folded channels, cdtype
#   h_ref : (H,  GG*sCgin)      halo rows (first rows of the next tile), cdtype
#   w_ref : (GG, Qm*sCgin, TCo) phase-folded weights for the GG groups, cdtype
#   b_ref : (1, GG*TCo)         bias, f32
#   o_ref : (TL, GG*TCo)        output tile, cdtype
#   scratch: xwin (TL+H, GG*sCgin) f32, [slab (TL, Qm*sCgin) cdtype], acc (TL,GG*TCo) f32
# -----------------------------------------------------------------------------
def _conv_kernel(x_ref, h_ref, w_ref, b_ref, o_ref, *scratch,
                 GG, Qm, sCgin, TCo, TL, use_slab, act, slope):
    if use_slab:
        xwin_ref, slab_ref, acc_ref = scratch
    else:
        xwin_ref, acc_ref = scratch

    # Stage the (TL + H)-row window once (single cast, not per tap).
    xwin_ref[0:TL, :] = x_ref[...].astype(jnp.float32)
    xwin_ref[TL:, :] = h_ref[...].astype(jnp.float32)

    for j in range(GG):                       # groups handled in this grid step
        c0 = j * sCgin
        o0 = j * TCo
        if use_slab:
            # Fold the Qm phase-folded taps into the contraction: build an im2col
            # slab (one contiguous copy per tap), then ONE full-depth MXU matmul.
            for q in range(Qm):
                slab_ref[:, q * sCgin:(q + 1) * sCgin] = (
                    xwin_ref[q:q + TL, c0:c0 + sCgin].astype(slab_ref.dtype))
            acc_ref[:, o0:o0 + TCo] = jnp.dot(
                slab_ref[...], w_ref[j], preferred_element_type=jnp.float32)
        elif sCgin == 1:
            # Layer 0 (single input channel): pure VPU broadcast multiply-accumulate,
            # taps sliced from the padded VMEM window (no HBM im2col).
            for q in range(Qm):
                xq = xwin_ref[q:q + TL, c0:c0 + 1]                     # (TL, 1) f32
                wrow = w_ref[j, q:q + 1, :].astype(jnp.float32)        # (1, TCo)
                part = xq * wrow
                if q == 0:
                    acc_ref[:, o0:o0 + TCo] = part
                else:
                    acc_ref[:, o0:o0 + TCo] += part
        else:
            # Dense layers: contraction is already >= 1024 per tap -> per-tap dots.
            for q in range(Qm):
                lhs = xwin_ref[q:q + TL, c0:c0 + sCgin].astype(w_ref.dtype)
                part = jnp.dot(lhs, w_ref[j, q * sCgin:(q + 1) * sCgin, :],
                               preferred_element_type=jnp.float32)
                if q == 0:
                    acc_ref[:, o0:o0 + TCo] = part
                else:
                    acc_ref[:, o0:o0 + TCo] += part

    y = acc_ref[...] + b_ref[...]
    if act:
        y = jnp.where(y >= 0, y, slope * y)   # LeakyReLU
    o_ref[...] = y.astype(o_ref.dtype)        # single lane-dense store per tile


def conv1d_nlc(x, w, b, *, K, stride, pad, groups, act,
               slope=0.1, cdtype=jnp.bfloat16, tl_max=512):
    """Grouped Conv1d (+ optional LeakyReLU) on NLC input.

    x: (N, L, C_in), w: (G, K, Cg_in, Cg_out), b: (C_out,)
    Returns (N, L_out, C_out) in `cdtype`.  Zero padding as in nn.Conv1d.
    """
    N, L, C_in = x.shape
    G = groups
    Cg_in = C_in // G
    C_out = b.shape[0]
    Cg_out = C_out // G
    s = stride
    assert G * Cg_in == C_in and G * Cg_out == C_out
    L_out = (L + 2 * pad - K) // s + 1
    assert L_out >= 1

    Qm = -(-K // s)                        # taps per stride phase (ceil(K/s))
    sCgin = s * Cg_in                      # phase-folded channel width per group
    H = max(Qm - 1, 1)                     # halo rows needed past the tile

    if sCgin == 1:
        # Single-input-channel layer: negligible traffic; keep it entirely in f32 so
        # the 1-lane tap handling stays on the most robust layouts.
        cdtype = jnp.float32

    TL = min(_round_up(L_out, 8), tl_max)
    TL = max(TL, _round_up(H, 8))          # halo must fit inside one tile
    T = -(-L_out // TL)
    L_ph = (T + 1) * TL                    # +1 tile so the last tile's halo rows exist
    Lpad = L_ph * s

    # Groups per grid step: lane-dense (>=128) input/output blocks, ~256 output lanes.
    GG = 1
    while GG < G and (GG * Cg_out < 256 or GG * sCgin < 128):
        GG *= 2
    GB = G // GG
    # Output-channel tiling inside a group (only the dense 1024-wide layers need it).
    TCo = 256 if (GG == 1 and Cg_out > 256) else Cg_out
    CoB = Cg_out // TCo
    assert GB == 1 or CoB == 1
    assert (GG * TCo) % 128 == 0 or GG * TCo == C_out
    use_slab = 1 < sCgin <= 128            # fold taps into the contraction
    Wg = GG * sCgin
    QsC = Qm * sCgin

    # ---- glue: zero-pad + phase-fold the activation (reshape/transpose only) ------
    x = x.astype(cdtype)
    right = Lpad - L - pad
    assert right >= 0
    xpad = jnp.pad(x, ((0, 0), (pad, right), (0, 0)))
    # xf[n, j, g*sCgin + p*Cg_in + c] = xpad[n, j*s + p, g*Cg_in + c]
    xf = xpad.reshape(N, L_ph, s, G, Cg_in).transpose(0, 1, 3, 2, 4)
    xf = xf.reshape(N, L_ph, G * sCgin)
    # Halo: only the first H rows of the *next* tile (not a full extra tile).
    halo = xf[:, TL:, :].reshape(N, T, TL, G * sCgin)[:, :, :H, :]

    # ---- glue: weights -> (GB, CoB, GG, Qm*sCgin, TCo), taps folded per phase ------
    # wr[g, q, p*Cg_in + c, o] = w[g, q*s + p, c, o]  (zero for phantom taps q*s+p>=K)
    wq = jnp.pad(w, ((0, 0), (0, Qm * s - K), (0, 0), (0, 0)))
    wq = wq.reshape(G, Qm, s, Cg_in, Cg_out).reshape(G, Qm, sCgin, Cg_out)
    wq = wq.reshape(GB, GG, Qm, sCgin, CoB, TCo).transpose(0, 4, 1, 2, 3, 5)
    wq = wq.reshape(GB, CoB, GG, QsC, TCo).astype(cdtype)
    bq = b.reshape(GB, GG, CoB, TCo).transpose(0, 2, 1, 3)
    bq = bq.reshape(GB, CoB, 1, GG * TCo).astype(jnp.float32)

    kernel = functools.partial(_conv_kernel, GG=GG, Qm=Qm, sCgin=sCgin, TCo=TCo,
                               TL=TL, use_slab=use_slab, act=act, slope=slope)

    scratch = [pltpu.VMEM((TL + H, Wg), jnp.float32)]
    if use_slab:
        scratch.append(pltpu.VMEM((TL, QsC), cdtype))
    scratch.append(pltpu.VMEM((TL, GG * TCo), jnp.float32))

    out = pl.pallas_call(
        kernel,
        out_shape=jax.ShapeDtypeStruct((N, T * TL, C_out), cdtype),
        grid_spec=pltpu.PrefetchScalarGridSpec(
            num_scalar_prefetch=0,
            grid=(GB, CoB, N, T),
            in_specs=[
                # current L-tile (phase-folded channels of the GG groups)
                pl.BlockSpec((None, TL, Wg), lambda gb, cb, n, t: (n, t, gb)),
                # halo rows only (H << TL)
                pl.BlockSpec((None, None, H, Wg), lambda gb, cb, n, t: (n, t, 0, gb)),
                # weight block (resident across the inner n, t axes)
                pl.BlockSpec((None, None, GG, QsC, TCo),
                             lambda gb, cb, n, t: (gb, cb, 0, 0, 0)),
                pl.BlockSpec((None, None, 1, GG * TCo),
                             lambda gb, cb, n, t: (gb, cb, 0, 0)),
            ],
            out_specs=pl.BlockSpec(
                (None, TL, GG * TCo),
                lambda gb, cb, n, t: (n, t, gb * CoB + cb)),
            scratch_shapes=scratch,
        ),
        compiler_params=pltpu.CompilerParams(
            dimension_semantics=("parallel", "parallel", "parallel", "parallel"),
            vmem_limit_bytes=48 * 1024 * 1024,
        ),
    )(xf, halo, wq, bq)

    return out[:, :L_out, :]


# -----------------------------------------------------------------------------
# AvgPool1d(4, 2, padding=2), count_include_pad=True: pure VPU kernel (no MXU).
# -----------------------------------------------------------------------------
def _avgpool_kernel(e_ref, o_ref, y_ref, *, L_out):
    e = e_ref[...]
    o = o_ref[...]
    y_ref[...] = 0.25 * (e[:, :L_out] + o[:, :L_out]
                         + e[:, 1:L_out + 1] + o[:, 1:L_out + 1])


def avg_pool1d_ncl(x_ncl):
    """nn.AvgPool1d(4, 2, padding=2) on (N, 1, L)."""
    N, C, L = x_ncl.shape
    assert C == 1
    L_out = L // 2 + 1
    xp = jnp.pad(x_ncl[:, 0, :], ((0, 0), (2, 2)))
    even = jax.lax.slice(xp, (0, 0), (N, 2 * L_out + 1), (1, 2))   # (N, L_out + 1)
    odd = jax.lax.slice(xp, (0, 1), (N, 2 * L_out + 2), (1, 2))    # (N, L_out + 1)
    # TODO(synk): tile over L for extremely long waveforms; whole-array VMEM is fine
    # for typical discriminator batch/length products.
    y = pl.pallas_call(
        functools.partial(_avgpool_kernel, L_out=L_out),
        out_shape=jax.ShapeDtypeStruct((N, L_out), jnp.float32),
    )(even, odd)
    return y[:, None, :]


# -----------------------------------------------------------------------------
# Module parameters / forward (plain-JAX glue around the kernels)
# -----------------------------------------------------------------------------
#               (C_in, C_out, K, stride, pad, groups)
LAYER_SPECS = [
    (1,    128,  15, 1, 7,  1),
    (128,  128,  41, 2, 20, 4),
    (128,  256,  41, 2, 20, 16),
    (256,  512,  41, 4, 20, 16),
    (512,  1024, 41, 4, 20, 16),
    (1024, 1024, 41, 1, 20, 16),
    (1024, 1024, 5,  1, 2,  1),
    (1024, 1,    3,  1, 1,  1),
]


def init_msd_subblock(key):
    """Weights stored group-major (G, K, Cg_in, Cg_out); torch-equivalent uniform init."""
    params = []
    n_layers = len(LAYER_SPECS)
    for i, (cin, cout, K, stride, pad, groups) in enumerate(LAYER_SPECS):
        key, kw, kb = jax.random.split(key, 3)
        cg_in, cg_out = cin // groups, cout // groups
        bound = 1.0 / math.sqrt(cg_in * K)
        w = jax.random.uniform(kw, (groups, K, cg_in, cg_out), jnp.float32,
                               -bound, bound)
        b = jax.random.uniform(kb, (cout,), jnp.float32, -bound, bound)
        out_keep = cout
        if groups == 1 and cout < 128:
            # last layer (C_out == 1): pad output channels to a lane-dense 128,
            # channel 0 is sliced back out in glue (padded channels compute 0).
            w = jnp.pad(w, ((0, 0), (0, 0), (0, 0), (0, 128 - cg_out)))
            b = jnp.pad(b, ((0, 128 - cout),))
        params.append(dict(w=w, b=b, K=K, stride=stride, pad=pad, groups=groups,
                           act=(i < n_layers - 1), out_keep=out_keep,
                           tl_max=512 if cin <= 256 else 256))
    return params, key


def msd_subblock_forward(x_ncl, params, slope=0.1, cdtype=jnp.bfloat16):
    x = jnp.transpose(x_ncl, (0, 2, 1))            # NCL -> NLC once; stay NLC inside
    feature_map = []
    for p in params:
        x = conv1d_nlc(x, p['w'], p['b'], K=p['K'], stride=p['stride'], pad=p['pad'],
                       groups=p['groups'], act=p['act'], slope=slope,
                       cdtype=cdtype, tl_max=p['tl_max'])
        if p['out_keep'] != x.shape[-1]:
            x = x[:, :, :p['out_keep']]            # drop lane-padding channels
        feature_map.append(jnp.transpose(x, (0, 2, 1)))   # NCL only at API boundary
    flat = x.reshape(x.shape[0], -1)               # == torch.flatten(x, 1, -1)
    return flat, feature_map


def msd_block_forward(real_ncl, fake_ncl, all_params, cdtype=jnp.bfloat16):
    """cdtype=jnp.bfloat16 (default): bf16 HBM/MXU with f32 accumulation.
    Pass cdtype=jnp.float32 to reproduce the torch f32 reference exactly."""
    N = real_ncl.shape[0]
    # Batch real and fake through the same pallas_calls.
    x_cat = jnp.concatenate([real_ncl, fake_ncl], axis=0)
    pooled = avg_pool1d_ncl(x_cat)                 # shared by scales 1 and 2

    real_res, real_fm, fake_res, fake_fm = [], [], [], []
    for idx, sub_params in enumerate(all_params):
        inp = x_cat if idx == 0 else pooled
        res, fm = msd_subblock_forward(inp, sub_params, cdtype=cdtype)
        real_res.append(res[:N])
        fake_res.append(res[N:])
        real_fm.append([f[:N] for f in fm])
        fake_fm.append([f[N:] for f in fm])
    assert len(fake_fm) == len(real_fm) == len(fake_res) == len(real_res)
    return real_res, real_fm, fake_res, fake_fm


# -----------------------------------------------------------------------------
if __name__ == "__main__":
    key = jax.random.PRNGKey(0)

    # three independent MSDSubBlocks (one per scale), as in MSDBlock.__init__
    all_params = []
    for _ in range(3):
        p, key = init_msd_subblock(key)
        all_params.append(p)

    key, kr, kf = jax.random.split(key, 3)
    N, C, L = 2, 1, 64                              # small 1-channel waveform
    real = jax.random.normal(kr, (N, C, L), jnp.float32)
    fake = jax.random.normal(kf, (N, C, L), jnp.float32)

    out = msd_block_forward(real, fake, all_params)
    out = jax.block_until_ready(out)

    real_res, real_fm, fake_res, fake_fm = out
    assert len(real_res) == 3 and len(real_fm) == 3
    assert all(len(fm) == 8 for fm in real_fm)
    assert all(r.shape[0] == N for r in real_res)
    print("KERNEL_OK")
</pallas_src>

<mosaic_0001>
module attributes {stable_mosaic.version = 11 : i64} {
  func.func @_avgpool_kernel(%arg0: memref<4x34xf32, #tpu.memory_space<vmem>>, %arg1: memref<4x34xf32, #tpu.memory_space<vmem>>, %arg2: memref<4x33xf32, #tpu.memory_space<vmem>>) attributes {dimension_semantics = [], scalar_prefetch = 0 : i64, scratch_operands = 0 : i64, tpu.core_type = #tpu.core_type<tc>} {
    %c0 = arith.constant 0 : index
    %c0_0 = arith.constant 0 : index
    %0 = vector.load %arg0[%c0, %c0_0] : memref<4x34xf32, #tpu.memory_space<vmem>>, vector<4x34xf32>
    %c0_1 = arith.constant 0 : index
    %c0_2 = arith.constant 0 : index
    %1 = vector.load %arg1[%c0_1, %c0_2] : memref<4x34xf32, #tpu.memory_space<vmem>>, vector<4x34xf32>
    %2 = vector.extract_strided_slice %0 {offsets = [0, 0], sizes = [4, 33], strides = [1, 1]} : vector<4x34xf32> to vector<4x33xf32>
    %3 = vector.extract_strided_slice %1 {offsets = [0, 0], sizes = [4, 33], strides = [1, 1]} : vector<4x34xf32> to vector<4x33xf32>
    %4 = arith.addf %2, %3 : vector<4x33xf32>
    %5 = vector.extract_strided_slice %0 {offsets = [0, 1], sizes = [4, 33], strides = [1, 1]} : vector<4x34xf32> to vector<4x33xf32>
    %6 = arith.addf %4, %5 : vector<4x33xf32>
    %7 = vector.extract_strided_slice %1 {offsets = [0, 1], sizes = [4, 33], strides = [1, 1]} : vector<4x34xf32> to vector<4x33xf32>
    %8 = arith.addf %6, %7 : vector<4x33xf32>
    %cst = arith.constant 2.500000e-01 : f32
    %9 = vector.broadcast %cst : f32 to vector<4x33xf32>
    %10 = arith.mulf %9, %8 : vector<4x33xf32>
    %c0_3 = arith.constant 0 : index
    %c0_4 = arith.constant 0 : index
    %11 = vector.load %arg2[%c0_3, %c0_4] : memref<4x33xf32, #tpu.memory_space<vmem>>, vector<4x33xf32>
    tpu.vector_store %arg2[%c0_3, %c0_4], %10 {strides = array<i32>} : memref<4x33xf32, #tpu.memory_space<vmem>>, vector<4x33xf32>,
    return
  }
}

</mosaic_0001>

<llo_original>
// kernel: tpu_custom_call.1
$region0: #{tpu_custom_call.1}
  #allocation0 [shape = 'u32[]', space=smem, size = 0x4, offset = 0x4, fixed_abs, tag = 'smem constant byte address 0x4 - core index']
  #allocation1 [shape = 'u32[144,128]{1,0:T(1,128)}', space=vmem, size = 0x12000, scoped, tag = 'internal scratch']
  %s0 = inlined_call_operand.hbm [shape: f32[4,34], index: 0, kind: input, shape index: {}]
  %s1 = inlined_call_operand.hbm [shape: f32[4,34], index: 1, kind: input, shape index: {}]
  %s2 = inlined_call_operand.hbm [shape: f32[4,33], index: 2, kind: output, shape index: {}]
  %s3 = sld [smem:[#allocation0]]
  $region26: #{tpu_custom_call.1} parent=0
    _
  %s5 = ssub.s32 1, %s3
  %s6 = scalar_select 0, %s5, %s3
  $region1: #{tpu_custom_call.1} parent=0
    #allocation2 [shape = 'u8[2048]{0}', space=vmem, size = 0x800, scoped, tag = 'input window, operand 0, single buffered']
    #allocation3 [shape = 's32[1]{0}', space=sflag, size = 0x4, scoped, tag = 'scoped memory for tpu_custom_call.1']
    #allocation4 [shape = 's32[1]{0}', space=sflag, size = 0x4, scoped, tag = 'scoped memory for tpu_custom_call.1']
    #allocation5 [shape = 'u8[2048]{0}', space=vmem, size = 0x800, scoped, tag = 'input window, operand 1, single buffered']
    #allocation6 [shape = 's32[1]{0}', space=sflag, size = 0x4, scoped, tag = 'scoped memory for tpu_custom_call.1']
    #allocation7 [shape = 'u8[2048]{0}', space=vmem, size = 0x800, scoped, tag = 'output window, operand 0, single buffered']
    %7 = vsyncpa [#allocation3], 0
    %8 = vsyncpa [#allocation6], 0
    %9 = vsyncpa [#allocation4], 0
    // Predicated region
    $region2: #{tpu_custom_call.1} parent=1 // pred_check
      _
    $region3: #{tpu_custom_call.1} parent=1 // pred_check_branch
      %11 = sbr.rel (0) target = $region5
    $region4: #{tpu_custom_call.1} parent=1 // pred_region
      %s13 = ssub.s32 64, 64
      %14 = vsyncadd [#allocation3], %s13
      %s16 = sshll.u32 [#allocation2], 4
      %s17 = int_to_ptr.vmem [resolvable:$true] %s16
      %19 = dma.hbm_to_vmem [thread:$0]  %s0, 64, %s17, [#allocation3]
    $region5: #{tpu_custom_call.1} parent=1 // pred_fallthru
      _
    // Predicated region
    $region6: #{tpu_custom_call.1} parent=1 // pred_check
      _
    $region7: #{tpu_custom_call.1} parent=1 // pred_check_branch
      %21 = sbr.rel (0) target = $region9
    $region8: #{tpu_custom_call.1} parent=1 // pred_region
      %s23 = ssub.s32 64, 64
      %24 = vsyncadd [#allocation6], %s23
      %s26 = sshll.u32 [#allocation5], 4
      %s27 = int_to_ptr.vmem [resolvable:$true] %s26
      %29 = dma.hbm_to_vmem [thread:$0]  %s1, 64, %s27, [#allocation6]
    $region9: #{tpu_custom_call.1} parent=1 // pred_fallthru
      _
    // Predicated region
    $region10: #{tpu_custom_call.1} parent=1 // pred_check
      _
    $region11: #{tpu_custom_call.1} parent=1 // pred_check_branch
      %31 = sbr.rel (0) target = $region13
    $region12: #{tpu_custom_call.1} parent=1 // pred_region
      %32 = dma.done [#allocation3], 64
    $region13: #{tpu_custom_call.1} parent=1 // pred_fallthru
      _
    // Predicated region
    $region14: #{tpu_custom_call.1} parent=1 // pred_check
      _
    $region15: #{tpu_custom_call.1} parent=1 // pred_check_branch
      %34 = sbr.rel (0) target = $region17
    $region16: #{tpu_custom_call.1} parent=1 // pred_region
      %35 = dma.done [#allocation6], 64
    $region17: #{tpu_custom_call.1} parent=1 // pred_fallthru
      _
    %v36 = vld [vmem:[#allocation2] sm:$0xf]
    %v37 = vld [vmem:[#allocation5] sm:$0xf]
    %v38 = vadd.f32 %v36, %v37
    %40 = vrot.lane.b32.xlu0 %v36, 127
    %v41 = vpop.permute.xlu0 %40
    %v43 = vadd.f32 %v38, %v41
    %45 = vrot.lane.b32.xlu0 %v37, 127
    %v46 = vpop.permute.xlu0 %45
    %v48 = vadd.f32 %v43, %v46
    %v49 = vmul.f32 %v48, 0.25
    %vm50 = vcmask 265216
    %51 = vst.msk [vmem:[#allocation7] sm:$0xf] %vm50, %v49
    // Predicated region
    $region18: #{tpu_custom_call.1} parent=1 // pred_check
      _
    $region19: #{tpu_custom_call.1} parent=1 // pred_check_branch
      %53 = sbr.rel (0) target = $region21
    $region20: #{tpu_custom_call.1} parent=1 // pred_region
      %s55 = ssub.s32 64, 64
      %56 = vsyncadd [#allocation4], %s55
      %s58 = sshll.u32 [#allocation7], 4
      %s59 = int_to_ptr.vmem [resolvable:$true] %s58
      %61 = dma.vmem_to_hbm [thread:$0]  %s59, 64, %s2, [#allocation4]
    $region21: #{tpu_custom_call.1} parent=1 // pred_fallthru
      _
    // Predicated region
    $region22: #{tpu_custom_call.1} parent=1 // pred_check
      _
    $region23: #{tpu_custom_call.1} parent=1 // pred_check_branch
      %63 = sbr.rel (0) target = $region25
    $region24: #{tpu_custom_call.1} parent=1 // pred_region
      %64 = dma.done [#allocation4], 64
    $region25: #{tpu_custom_call.1} parent=1 // pred_fallthru
      _
    %65 = vsyncpa [#allocation3], 1
    %66 = vsyncpa [#allocation6], 1
    %67 = vsyncpa [#allocation4], 1

</llo_original>
